<compile_context>
chip_gen: v5e
topology: v5e:2x2
jax: 0.10.0
libtpu: 0.0.40
codegen_flags: <defaults>
</compile_context>

<pallas_src>
import functools

import jax
import jax.numpy as jnp
from jax.experimental import pallas as pl
from jax.experimental.pallas import tpu as pltpu


# --------------------------------------------------------------------------- #
# Kernel: per-(batch, H-chunk) statistics, accumulated in resident out blocks. #
# --------------------------------------------------------------------------- #
def _dice_focal_stats_kernel(x_ref, t_ref,
                             inter_ref, sump_ref, count_ref, focal_ref,
                             *, gamma, focal_alpha, exp_dtype):
    h = pl.program_id(1)

    @pl.when(h == 0)
    def _init():
        inter_ref[...] = jnp.zeros_like(inter_ref)
        sump_ref[...] = jnp.zeros_like(sump_ref)
        count_ref[...] = jnp.zeros_like(count_ref)
        focal_ref[...] = jnp.zeros_like(focal_ref)

    x = x_ref[0].astype(jnp.float32)          # [C, TH, W]  (W on lanes)
    t = t_ref[0]                              # [TH, W] int32
    c, th, w = x.shape
    r = inter_ref.shape[2]                    # accumulator sublane rows (8 or TH)

    def _rows(v):
        # [TH, W] -> [R, W] with aligned static slices + VPU adds (no XLU).
        if th == r:
            return v
        acc = v[0:r]
        for i in range(1, th // r):
            acc = acc + v[i * r:(i + 1) * r]
        return acc

    # ---- softmax pieces over the class (leading) axis ------------------------
    m = jnp.max(x, axis=0, keepdims=True)                     # [1, TH, W]
    xs = x - m                                                # [C, TH, W]
    e = jnp.exp(xs.astype(exp_dtype)).astype(jnp.float32)     # bf16 EUP on v7x
    sum_e = jnp.sum(e, axis=0)                                # [TH, W]
    inv_sum = pl.reciprocal(sum_e, approx=True)               # EUP slot (free-ish)

    # ---- per-class masked statistics (unrolled over small C) -----------------
    pt = jnp.zeros((th, w), jnp.float32)      # softmax prob at the target class
    xs_t = jnp.zeros((th, w), jnp.float32)    # shifted logit at the target class
    for ci in range(c):
        mask = (t == ci)                                      # [TH, W] bool
        p_c = e[ci] * inv_sum                                 # [TH, W]
        po_c = jnp.where(mask, p_c, 0.0)
        pt = pt + po_c
        xs_t = xs_t + jnp.where(mask, xs[ci], 0.0)
        inter_ref[0, ci] += _rows(po_c)                       # tp
        sump_ref[0, ci] += _rows(p_c)                         # sum of probas
        count_ref[0, ci] += _rows(jnp.where(mask, 1.0, 0.0))  # one-hot counts

    # ---- focal term (log-softmax formulation) ---------------------------------
    ce = jnp.log(sum_e) - xs_t                                # [TH, W]
    one_minus_pt = 1.0 - pt
    g = float(gamma)
    if g == int(g) and int(g) >= 0:
        gi = int(g)
        if gi == 0:
            fl = focal_alpha * ce
        else:
            mod = one_minus_pt
            for _ in range(gi - 1):
                mod = mod * one_minus_pt
            fl = focal_alpha * mod * ce
    else:
        # Guarded pow: (1-pt) can be exactly 0 and exp(g*log(0)) would NaN.
        safe = jnp.maximum(one_minus_pt, 1e-20)
        mod = jnp.where(one_minus_pt > 0.0, jnp.exp(g * jnp.log(safe)), 0.0)
        fl = focal_alpha * mod * ce
    focal_ref[0] += _rows(fl)                                 # [R, W]


# --------------------------------------------------------------------------- #
# Tile / VMEM planning                                                         #
# --------------------------------------------------------------------------- #
def _device_kind():
    try:
        return jax.devices()[0].device_kind.lower()
    except Exception:
        return ""


def _vmem_plan(vmem_limit_bytes):
    kind = _device_kind()
    is_v7 = ("v7" in kind) or ("7x" in kind)
    if vmem_limit_bytes is None:
        # v7x: 64 MiB physical VMEM -> keep scoped limit well under it.
        # v5e/v6e: 128 MiB physical -> raise the limit so tiles can grow.
        vmem_limit_bytes = (48 if is_v7 else 100) * 1024 * 1024
    budget = int(vmem_limit_bytes * 0.9)
    return budget, vmem_limit_bytes, is_v7


def _pick_row_tile(H, C, W, in_bytes, budget, requested=None):
    """Largest H-row tile that (a) divides H, (b) respects the TPU sublane
    alignment for the input dtype, (c) fits the VMEM budget with double-buffered
    input blocks plus ~5 full-tile f32 temporaries."""
    align = 8 if in_bytes >= 4 else (16 if in_bytes == 2 else 32)
    if requested is not None:
        assert H % requested == 0, "row_tile must divide H"
        assert requested == H or requested % align == 0, \
            f"row_tile must be H or a multiple of {align} for this dtype"
        return requested
    per_row = 2 * (C * W * in_bytes + W * 4) + 5 * C * W * 4
    th_max = max(align, budget // per_row)
    if H <= th_max:
        return H
    best = 0
    th = align
    while th <= min(H, th_max):
        if H % th == 0:
            best = th
        th += align
    if best:
        return best
    # Best effort: smallest aligned divisor (may exceed budget), else full H.
    th = align
    while th <= H:
        if H % th == 0:
            return th
        th += align
    return H


# --------------------------------------------------------------------------- #
# Wrapper                                                                      #
# --------------------------------------------------------------------------- #
def dice_focal_loss(inputs, targets, *, smooth=1.0, gamma=2.0, focal_alpha=0.25,
                    mix_alpha=0.75, row_tile=None, use_bf16_exp=None,
                    vmem_limit_bytes=None):
    """inputs: [B, C, H, W] logits (f32 or bf16); targets: [B, H, W] or
    [B, 1, H, W] integer labels. Returns the scalar DiceFocal loss."""
    B, C, H, W = inputs.shape
    t = targets.astype(jnp.int32)
    if t.ndim == 4:
        t = t[:, 0]

    in_bytes = inputs.dtype.itemsize
    budget, limit, is_v7 = _vmem_plan(vmem_limit_bytes)
    th = _pick_row_tile(H, C, W, in_bytes, budget, row_tile)
    r = 8 if th % 8 == 0 else th
    if use_bf16_exp is None:
        use_bf16_exp = is_v7        # single EUP binds on v7x; f32 elsewhere
    exp_dtype = jnp.bfloat16 if use_bf16_exp else jnp.float32

    kernel = functools.partial(
        _dice_focal_stats_kernel,
        gamma=float(gamma), focal_alpha=float(focal_alpha), exp_dtype=exp_dtype)

    stat_shape = jax.ShapeDtypeStruct((B, C, r, W), jnp.float32)
    focal_shape = jax.ShapeDtypeStruct((B, r, W), jnp.float32)

    inter, sump, count, focal_part = pl.pallas_call(
        kernel,
        out_shape=(stat_shape, stat_shape, stat_shape, focal_shape),
        grid_spec=pltpu.PrefetchScalarGridSpec(
            num_scalar_prefetch=0,
            grid=(B, H // th),
            in_specs=[
                pl.BlockSpec((1, C, th, W), lambda b, h: (b, 0, h, 0)),
                pl.BlockSpec((1, th, W), lambda b, h: (b, h, 0)),
            ],
            out_specs=(
                pl.BlockSpec((1, C, r, W), lambda b, h: (b, 0, 0, 0)),
                pl.BlockSpec((1, C, r, W), lambda b, h: (b, 0, 0, 0)),
                pl.BlockSpec((1, C, r, W), lambda b, h: (b, 0, 0, 0)),
                pl.BlockSpec((1, r, W), lambda b, h: (b, 0, 0)),
            )),
        compiler_params=pltpu.CompilerParams(
            dimension_semantics=("parallel", "arbitrary"),
            vmem_limit_bytes=limit),
    )(inputs, t)

    # Tiny finalize in JAX (keeps the grid B-parallel across TensorCores).
    inter_cw = jnp.sum(inter, axis=(0, 2))                    # [C, W]
    card_cw = jnp.sum(sump, axis=(0, 2)) + jnp.sum(count, axis=(0, 2))
    dice = jnp.mean((2.0 * inter_cw + smooth) / (card_cw + smooth))
    dice_loss = 1.0 - dice
    focal_loss = jnp.sum(focal_part) / float(B * H * W)
    return mix_alpha * focal_loss + (1.0 - mix_alpha) * dice_loss


# --------------------------------------------------------------------------- #
# Pure-JAX reference (mirrors the PyTorch DiceFocalLoss module exactly)        #
# --------------------------------------------------------------------------- #
def dice_focal_loss_ref(inputs, targets, smooth=1.0, gamma=2.0,
                        focal_alpha=0.25, mix_alpha=0.75):
    C = inputs.shape[1]
    onehot = jax.nn.one_hot(targets, C, axis=1, dtype=inputs.dtype)   # [B,C,H,W]
    probas = jax.nn.softmax(inputs, axis=1)
    dims = (0,) + tuple(range(2, targets.ndim))                       # (0, 2)
    intersection = jnp.sum(probas * onehot, axis=dims)
    cardinality = jnp.sum(probas + onehot, axis=dims)
    dice = jnp.mean((2.0 * intersection + smooth) / (cardinality + smooth))
    dice_loss = 1.0 - dice

    logp = jax.nn.log_softmax(inputs, axis=1)
    ce = -jnp.take_along_axis(logp, targets[:, None], axis=1)[:, 0]   # [B,H,W]
    pt = jnp.exp(-ce)
    focal_loss = jnp.mean(focal_alpha * (1.0 - pt) ** gamma * ce)

    return mix_alpha * focal_loss + (1.0 - mix_alpha) * dice_loss


if __name__ == "__main__":
    B, C, H, W = 2, 4, 16, 16
    key = jax.random.PRNGKey(0)
    k1, k2 = jax.random.split(key)
    inputs = jax.random.normal(k1, (B, C, H, W), dtype=jnp.float32)
    targets = jax.random.randint(k2, (B, H, W), 0, C, dtype=jnp.int32)

    ref = dice_focal_loss_ref(inputs, targets)

    # row_tile=8 -> grid (B, H//8) = (2, 2): exercises init + accumulate across
    # H steps; f32 exp to check against the reference at tight tolerance.
    loss = dice_focal_loss(inputs, targets, row_tile=8, use_bf16_exp=False)
    loss = jax.block_until_ready(loss)
    assert jnp.allclose(loss, ref, atol=5e-3, rtol=5e-3), (loss, ref)

    # Auto-tuned path (generation-aware tile size, bf16 exp on v7x).
    loss_auto = jax.block_until_ready(dice_focal_loss(inputs, targets))
    assert jnp.allclose(loss_auto, ref, atol=2e-2, rtol=2e-2), (loss_auto, ref)

    print("KERNEL_OK")
</pallas_src>

<mosaic_0001>
module attributes {stable_mosaic.version = 11 : i64} {
  func.func @_dice_focal_stats_kernel(%arg0: i32, %arg1: i32, %arg2: memref<1x4x8x16xf32, #tpu.memory_space<vmem>>, %arg3: memref<1x8x16xi32, #tpu.memory_space<vmem>>, %arg4: memref<1x4x8x16xf32, #tpu.memory_space<vmem>>, %arg5: memref<1x4x8x16xf32, #tpu.memory_space<vmem>>, %arg6: memref<1x4x8x16xf32, #tpu.memory_space<vmem>>, %arg7: memref<1x8x16xf32, #tpu.memory_space<vmem>>) attributes {dimension_semantics = [#tpu.dimension_semantics<parallel>, #tpu.dimension_semantics<arbitrary>], iteration_bounds = array<i64: 2, 2>, scalar_prefetch = 0 : i64, scratch_operands = 0 : i64, tpu.core_type = #tpu.core_type<tc>, window_params = [{transform_indices = @transform_0, window_bounds = array<i64: 1, 4, 8, 16>}, {transform_indices = @transform_1, window_bounds = array<i64: 1, 8, 16>}, {transform_indices = @transform_2, window_bounds = array<i64: 1, 4, 8, 16>}, {transform_indices = @transform_3, window_bounds = array<i64: 1, 4, 8, 16>}, {transform_indices = @transform_4, window_bounds = array<i64: 1, 4, 8, 16>}, {transform_indices = @transform_5, window_bounds = array<i64: 1, 8, 16>}]} {
    %c0_i32 = arith.constant 0 : i32
    %0 = arith.cmpi eq, %arg1, %c0_i32 : i32
    %1 = arith.extui %0 : i1 to i32
    %c0_i32_0 = arith.constant 0 : i32
    %2 = arith.cmpi ne, %1, %c0_i32_0 : i32
    scf.if %2 {
      %cst_128 = arith.constant 0.000000e+00 : f32
      %166 = vector.broadcast %cst_128 : f32 to vector<1x4x8x16xf32>
      %c0_129 = arith.constant 0 : index
      %c0_130 = arith.constant 0 : index
      %c0_131 = arith.constant 0 : index
      %c0_132 = arith.constant 0 : index
      %167 = vector.load %arg4[%c0_129, %c0_130, %c0_131, %c0_132] : memref<1x4x8x16xf32, #tpu.memory_space<vmem>>, vector<1x4x8x16xf32>
      tpu.vector_store %arg4[%c0_129, %c0_130, %c0_131, %c0_132], %166 {strides = array<i32>} : memref<1x4x8x16xf32, #tpu.memory_space<vmem>>, vector<1x4x8x16xf32>,
      %cst_133 = arith.constant 0.000000e+00 : f32
      %168 = vector.broadcast %cst_133 : f32 to vector<1x4x8x16xf32>
      %c0_134 = arith.constant 0 : index
      %c0_135 = arith.constant 0 : index
      %c0_136 = arith.constant 0 : index
      %c0_137 = arith.constant 0 : index
      %169 = vector.load %arg5[%c0_134, %c0_135, %c0_136, %c0_137] : memref<1x4x8x16xf32, #tpu.memory_space<vmem>>, vector<1x4x8x16xf32>
      tpu.vector_store %arg5[%c0_134, %c0_135, %c0_136, %c0_137], %168 {strides = array<i32>} : memref<1x4x8x16xf32, #tpu.memory_space<vmem>>, vector<1x4x8x16xf32>,
      %cst_138 = arith.constant 0.000000e+00 : f32
      %170 = vector.broadcast %cst_138 : f32 to vector<1x4x8x16xf32>
      %c0_139 = arith.constant 0 : index
      %c0_140 = arith.constant 0 : index
      %c0_141 = arith.constant 0 : index
      %c0_142 = arith.constant 0 : index
      %171 = vector.load %arg6[%c0_139, %c0_140, %c0_141, %c0_142] : memref<1x4x8x16xf32, #tpu.memory_space<vmem>>, vector<1x4x8x16xf32>
      tpu.vector_store %arg6[%c0_139, %c0_140, %c0_141, %c0_142], %170 {strides = array<i32>} : memref<1x4x8x16xf32, #tpu.memory_space<vmem>>, vector<1x4x8x16xf32>,
      %cst_143 = arith.constant 0.000000e+00 : f32
      %172 = vector.broadcast %cst_143 : f32 to vector<1x8x16xf32>
      %c0_144 = arith.constant 0 : index
      %c0_145 = arith.constant 0 : index
      %c0_146 = arith.constant 0 : index
      %173 = vector.load %arg7[%c0_144, %c0_145, %c0_146] : memref<1x8x16xf32, #tpu.memory_space<vmem>>, vector<1x8x16xf32>
      tpu.vector_store %arg7[%c0_144, %c0_145, %c0_146], %172 {strides = array<i32>} : memref<1x8x16xf32, #tpu.memory_space<vmem>>, vector<1x8x16xf32>,
    } else {
    }
    %c0 = arith.constant 0 : index
    %c0_1 = arith.constant 0 : index
    %c0_2 = arith.constant 0 : index
    %c0_3 = arith.constant 0 : index
    %3 = vector.load %arg2[%c0, %c0_1, %c0_2, %c0_3] : memref<1x4x8x16xf32, #tpu.memory_space<vmem>>, vector<1x4x8x16xf32>
    %4 = vector.shape_cast %3 : vector<1x4x8x16xf32> to vector<4x8x16xf32>
    %c0_4 = arith.constant 0 : index
    %c0_5 = arith.constant 0 : index
    %c0_6 = arith.constant 0 : index
    %5 = vector.load %arg3[%c0_4, %c0_5, %c0_6] : memref<1x8x16xi32, #tpu.memory_space<vmem>>, vector<1x8x16xi32>
    %6 = vector.shape_cast %5 : vector<1x8x16xi32> to vector<8x16xi32>
    %cst = arith.constant dense<0xFF800000> : vector<8x16xf32>
    %7 = vector.multi_reduction <maximumf>, %4, %cst [0] : vector<4x8x16xf32> to vector<8x16xf32>
    %8 = vector.shape_cast %7 : vector<8x16xf32> to vector<1x8x16xf32>
    %9 = vector.broadcast %8 : vector<1x8x16xf32> to vector<4x8x16xf32>
    %10 = arith.subf %4, %9 : vector<4x8x16xf32>
    %11 = math.exp %10 : vector<4x8x16xf32>
    %cst_7 = arith.constant dense<0.000000e+00> : vector<8x16xf32>
    %12 = vector.multi_reduction <add>, %11, %cst_7 [0] : vector<4x8x16xf32> to vector<8x16xf32>
    %13 = tpu.reciprocal %12 {approx = true} : vector<8x16xf32> -> vector<8x16xf32>
    %cst_8 = arith.constant 0.000000e+00 : f32
    %14 = vector.broadcast %cst_8 : f32 to vector<8x16xf32>
    %cst_9 = arith.constant 0.000000e+00 : f32
    %15 = vector.broadcast %cst_9 : f32 to vector<8x16xf32>
    %c0_i32_10 = arith.constant 0 : i32
    %16 = vector.broadcast %c0_i32_10 : i32 to vector<8x16xi32>
    %17 = arith.cmpi eq, %6, %16 : vector<8x16xi32>
    %18 = vector.extract_strided_slice %11 {offsets = [0, 0, 0], sizes = [1, 8, 16], strides = [1, 1, 1]} : vector<4x8x16xf32> to vector<1x8x16xf32>
    %19 = vector.shape_cast %18 : vector<1x8x16xf32> to vector<8x16xf32>
    %20 = arith.mulf %19, %13 : vector<8x16xf32>
    %cst_11 = arith.constant 0.000000e+00 : f32
    %21 = vector.broadcast %cst_11 : f32 to vector<8x16xf32>
    %22 = arith.select %17, %20, %21 : vector<8x16xi1>, vector<8x16xf32>
    %23 = arith.addf %14, %22 : vector<8x16xf32>
    %24 = vector.extract_strided_slice %10 {offsets = [0, 0, 0], sizes = [1, 8, 16], strides = [1, 1, 1]} : vector<4x8x16xf32> to vector<1x8x16xf32>
    %25 = vector.shape_cast %24 : vector<1x8x16xf32> to vector<8x16xf32>
    %cst_12 = arith.constant 0.000000e+00 : f32
    %26 = vector.broadcast %cst_12 : f32 to vector<8x16xf32>
    %27 = arith.select %17, %25, %26 : vector<8x16xi1>, vector<8x16xf32>
    %28 = arith.addf %15, %27 : vector<8x16xf32>
    %c0_13 = arith.constant 0 : index
    %c0_14 = arith.constant 0 : index
    %c0_15 = arith.constant 0 : index
    %c0_16 = arith.constant 0 : index
    %29 = vector.load %arg4[%c0_13, %c0_14, %c0_15, %c0_16] : memref<1x4x8x16xf32, #tpu.memory_space<vmem>>, vector<1x1x8x16xf32>
    %30 = vector.shape_cast %29 : vector<1x1x8x16xf32> to vector<8x16xf32>
    %31 = arith.addf %30, %22 : vector<8x16xf32>
    %c0_17 = arith.constant 0 : index
    %c0_18 = arith.constant 0 : index
    %c0_19 = arith.constant 0 : index
    %c0_20 = arith.constant 0 : index
    %32 = vector.load %arg4[%c0_17, %c0_18, %c0_19, %c0_20] : memref<1x4x8x16xf32, #tpu.memory_space<vmem>>, vector<1x1x8x16xf32>
    %33 = vector.shape_cast %32 : vector<1x1x8x16xf32> to vector<8x16xf32>
    %34 = vector.shape_cast %31 : vector<8x16xf32> to vector<1x1x8x16xf32>
    tpu.vector_store %arg4[%c0_17, %c0_18, %c0_19, %c0_20], %34 {strides = array<i32>} : memref<1x4x8x16xf32, #tpu.memory_space<vmem>>, vector<1x1x8x16xf32>,
    %c0_21 = arith.constant 0 : index
    %c0_22 = arith.constant 0 : index
    %c0_23 = arith.constant 0 : index
    %c0_24 = arith.constant 0 : index
    %35 = vector.load %arg5[%c0_21, %c0_22, %c0_23, %c0_24] : memref<1x4x8x16xf32, #tpu.memory_space<vmem>>, vector<1x1x8x16xf32>
    %36 = vector.shape_cast %35 : vector<1x1x8x16xf32> to vector<8x16xf32>
    %37 = arith.addf %36, %20 : vector<8x16xf32>
    %c0_25 = arith.constant 0 : index
    %c0_26 = arith.constant 0 : index
    %c0_27 = arith.constant 0 : index
    %c0_28 = arith.constant 0 : index
    %38 = vector.load %arg5[%c0_25, %c0_26, %c0_27, %c0_28] : memref<1x4x8x16xf32, #tpu.memory_space<vmem>>, vector<1x1x8x16xf32>
    %39 = vector.shape_cast %38 : vector<1x1x8x16xf32> to vector<8x16xf32>
    %40 = vector.shape_cast %37 : vector<8x16xf32> to vector<1x1x8x16xf32>
    tpu.vector_store %arg5[%c0_25, %c0_26, %c0_27, %c0_28], %40 {strides = array<i32>} : memref<1x4x8x16xf32, #tpu.memory_space<vmem>>, vector<1x1x8x16xf32>,
    %c0_29 = arith.constant 0 : index
    %c0_30 = arith.constant 0 : index
    %c0_31 = arith.constant 0 : index
    %c0_32 = arith.constant 0 : index
    %41 = vector.load %arg6[%c0_29, %c0_30, %c0_31, %c0_32] : memref<1x4x8x16xf32, #tpu.memory_space<vmem>>, vector<1x1x8x16xf32>
    %42 = vector.shape_cast %41 : vector<1x1x8x16xf32> to vector<8x16xf32>
    %cst_33 = arith.constant 1.000000e+00 : f32
    %cst_34 = arith.constant 0.000000e+00 : f32
    %43 = vector.broadcast %cst_33 : f32 to vector<8x16xf32>
    %44 = vector.broadcast %cst_34 : f32 to vector<8x16xf32>
    %45 = arith.select %17, %43, %44 : vector<8x16xi1>, vector<8x16xf32>
    %46 = arith.addf %42, %45 : vector<8x16xf32>
    %c0_35 = arith.constant 0 : index
    %c0_36 = arith.constant 0 : index
    %c0_37 = arith.constant 0 : index
    %c0_38 = arith.constant 0 : index
    %47 = vector.load %arg6[%c0_35, %c0_36, %c0_37, %c0_38] : memref<1x4x8x16xf32, #tpu.memory_space<vmem>>, vector<1x1x8x16xf32>
    %48 = vector.shape_cast %47 : vector<1x1x8x16xf32> to vector<8x16xf32>
    %49 = vector.shape_cast %46 : vector<8x16xf32> to vector<1x1x8x16xf32>
    tpu.vector_store %arg6[%c0_35, %c0_36, %c0_37, %c0_38], %49 {strides = array<i32>} : memref<1x4x8x16xf32, #tpu.memory_space<vmem>>, vector<1x1x8x16xf32>,
    %c1_i32 = arith.constant 1 : i32
    %50 = vector.broadcast %c1_i32 : i32 to vector<8x16xi32>
    %51 = arith.cmpi eq, %6, %50 : vector<8x16xi32>
    %52 = vector.extract_strided_slice %11 {offsets = [1, 0, 0], sizes = [1, 8, 16], strides = [1, 1, 1]} : vector<4x8x16xf32> to vector<1x8x16xf32>
    %53 = vector.shape_cast %52 : vector<1x8x16xf32> to vector<8x16xf32>
    %54 = arith.mulf %53, %13 : vector<8x16xf32>
    %cst_39 = arith.constant 0.000000e+00 : f32
    %55 = vector.broadcast %cst_39 : f32 to vector<8x16xf32>
    %56 = arith.select %51, %54, %55 : vector<8x16xi1>, vector<8x16xf32>
    %57 = arith.addf %23, %56 : vector<8x16xf32>
    %58 = vector.extract_strided_slice %10 {offsets = [1, 0, 0], sizes = [1, 8, 16], strides = [1, 1, 1]} : vector<4x8x16xf32> to vector<1x8x16xf32>
    %59 = vector.shape_cast %58 : vector<1x8x16xf32> to vector<8x16xf32>
    %cst_40 = arith.constant 0.000000e+00 : f32
    %60 = vector.broadcast %cst_40 : f32 to vector<8x16xf32>
    %61 = arith.select %51, %59, %60 : vector<8x16xi1>, vector<8x16xf32>
    %62 = arith.addf %28, %61 : vector<8x16xf32>
    %c0_41 = arith.constant 0 : index
    %c1 = arith.constant 1 : index
    %c0_42 = arith.constant 0 : index
    %c0_43 = arith.constant 0 : index
    %63 = vector.load %arg4[%c0_41, %c1, %c0_42, %c0_43] : memref<1x4x8x16xf32, #tpu.memory_space<vmem>>, vector<1x1x8x16xf32>
    %64 = vector.shape_cast %63 : vector<1x1x8x16xf32> to vector<8x16xf32>
    %65 = arith.addf %64, %56 : vector<8x16xf32>
    %c0_44 = arith.constant 0 : index
    %c1_45 = arith.constant 1 : index
    %c0_46 = arith.constant 0 : index
    %c0_47 = arith.constant 0 : index
    %66 = vector.load %arg4[%c0_44, %c1_45, %c0_46, %c0_47] : memref<1x4x8x16xf32, #tpu.memory_space<vmem>>, vector<1x1x8x16xf32>
    %67 = vector.shape_cast %66 : vector<1x1x8x16xf32> to vector<8x16xf32>
    %68 = vector.shape_cast %65 : vector<8x16xf32> to vector<1x1x8x16xf32>
    tpu.vector_store %arg4[%c0_44, %c1_45, %c0_46, %c0_47], %68 {strides = array<i32>} : memref<1x4x8x16xf32, #tpu.memory_space<vmem>>, vector<1x1x8x16xf32>,
    %c0_48 = arith.constant 0 : index
    %c1_49 = arith.constant 1 : index
    %c0_50 = arith.constant 0 : index
    %c0_51 = arith.constant 0 : index
    %69 = vector.load %arg5[%c0_48, %c1_49, %c0_50, %c0_51] : memref<1x4x8x16xf32, #tpu.memory_space<vmem>>, vector<1x1x8x16xf32>
    %70 = vector.shape_cast %69 : vector<1x1x8x16xf32> to vector<8x16xf32>
    %71 = arith.addf %70, %54 : vector<8x16xf32>
    %c0_52 = arith.constant 0 : index
    %c1_53 = arith.constant 1 : index
    %c0_54 = arith.constant 0 : index
    %c0_55 = arith.constant 0 : index
    %72 = vector.load %arg5[%c0_52, %c1_53, %c0_54, %c0_55] : memref<1x4x8x16xf32, #tpu.memory_space<vmem>>, vector<1x1x8x16xf32>
    %73 = vector.shape_cast %72 : vector<1x1x8x16xf32> to vector<8x16xf32>
    %74 = vector.shape_cast %71 : vector<8x16xf32> to vector<1x1x8x16xf32>
    tpu.vector_store %arg5[%c0_52, %c1_53, %c0_54, %c0_55], %74 {strides = array<i32>} : memref<1x4x8x16xf32, #tpu.memory_space<vmem>>, vector<1x1x8x16xf32>,
    %c0_56 = arith.constant 0 : index
    %c1_57 = arith.constant 1 : index
    %c0_58 = arith.constant 0 : index
    %c0_59 = arith.constant 0 : index
    %75 = vector.load %arg6[%c0_56, %c1_57, %c0_58, %c0_59] : memref<1x4x8x16xf32, #tpu.memory_space<vmem>>, vector<1x1x8x16xf32>
    %76 = vector.shape_cast %75 : vector<1x1x8x16xf32> to vector<8x16xf32>
    %cst_60 = arith.constant 1.000000e+00 : f32
    %cst_61 = arith.constant 0.000000e+00 : f32
    %77 = vector.broadcast %cst_60 : f32 to vector<8x16xf32>
    %78 = vector.broadcast %cst_61 : f32 to vector<8x16xf32>
    %79 = arith.select %51, %77, %78 : vector<8x16xi1>, vector<8x16xf32>
    %80 = arith.addf %76, %79 : vector<8x16xf32>
    %c0_62 = arith.constant 0 : index
    %c1_63 = arith.constant 1 : index
    %c0_64 = arith.constant 0 : index
    %c0_65 = arith.constant 0 : index
    %81 = vector.load %arg6[%c0_62, %c1_63, %c0_64, %c0_65] : memref<1x4x8x16xf32, #tpu.memory_space<vmem>>, vector<1x1x8x16xf32>
    %82 = vector.shape_cast %81 : vector<1x1x8x16xf32> to vector<8x16xf32>
    %83 = vector.shape_cast %80 : vector<8x16xf32> to vector<1x1x8x16xf32>
    tpu.vector_store %arg6[%c0_62, %c1_63, %c0_64, %c0_65], %83 {strides = array<i32>} : memref<1x4x8x16xf32, #tpu.memory_space<vmem>>, vector<1x1x8x16xf32>,
    %c2_i32 = arith.constant 2 : i32
    %84 = vector.broadcast %c2_i32 : i32 to vector<8x16xi32>
    %85 = arith.cmpi eq, %6, %84 : vector<8x16xi32>
    %86 = vector.extract_strided_slice %11 {offsets = [2, 0, 0], sizes = [1, 8, 16], strides = [1, 1, 1]} : vector<4x8x16xf32> to vector<1x8x16xf32>
    %87 = vector.shape_cast %86 : vector<1x8x16xf32> to vector<8x16xf32>
    %88 = arith.mulf %87, %13 : vector<8x16xf32>
    %cst_66 = arith.constant 0.000000e+00 : f32
    %89 = vector.broadcast %cst_66 : f32 to vector<8x16xf32>
    %90 = arith.select %85, %88, %89 : vector<8x16xi1>, vector<8x16xf32>
    %91 = arith.addf %57, %90 : vector<8x16xf32>
    %92 = vector.extract_strided_slice %10 {offsets = [2, 0, 0], sizes = [1, 8, 16], strides = [1, 1, 1]} : vector<4x8x16xf32> to vector<1x8x16xf32>
    %93 = vector.shape_cast %92 : vector<1x8x16xf32> to vector<8x16xf32>
    %cst_67 = arith.constant 0.000000e+00 : f32
    %94 = vector.broadcast %cst_67 : f32 to vector<8x16xf32>
    %95 = arith.select %85, %93, %94 : vector<8x16xi1>, vector<8x16xf32>
    %96 = arith.addf %62, %95 : vector<8x16xf32>
    %c0_68 = arith.constant 0 : index
    %c2 = arith.constant 2 : index
    %c0_69 = arith.constant 0 : index
    %c0_70 = arith.constant 0 : index
    %97 = vector.load %arg4[%c0_68, %c2, %c0_69, %c0_70] : memref<1x4x8x16xf32, #tpu.memory_space<vmem>>, vector<1x1x8x16xf32>
    %98 = vector.shape_cast %97 : vector<1x1x8x16xf32> to vector<8x16xf32>
    %99 = arith.addf %98, %90 : vector<8x16xf32>
    %c0_71 = arith.constant 0 : index
    %c2_72 = arith.constant 2 : index
    %c0_73 = arith.constant 0 : index
    %c0_74 = arith.constant 0 : index
    %100 = vector.load %arg4[%c0_71, %c2_72, %c0_73, %c0_74] : memref<1x4x8x16xf32, #tpu.memory_space<vmem>>, vector<1x1x8x16xf32>
    %101 = vector.shape_cast %100 : vector<1x1x8x16xf32> to vector<8x16xf32>
    %102 = vector.shape_cast %99 : vector<8x16xf32> to vector<1x1x8x16xf32>
    tpu.vector_store %arg4[%c0_71, %c2_72, %c0_73, %c0_74], %102 {strides = array<i32>} : memref<1x4x8x16xf32, #tpu.memory_space<vmem>>, vector<1x1x8x16xf32>,
    %c0_75 = arith.constant 0 : index
    %c2_76 = arith.constant 2 : index
    %c0_77 = arith.constant 0 : index
    %c0_78 = arith.constant 0 : index
    %103 = vector.load %arg5[%c0_75, %c2_76, %c0_77, %c0_78] : memref<1x4x8x16xf32, #tpu.memory_space<vmem>>, vector<1x1x8x16xf32>
    %104 = vector.shape_cast %103 : vector<1x1x8x16xf32> to vector<8x16xf32>
    %105 = arith.addf %104, %88 : vector<8x16xf32>
    %c0_79 = arith.constant 0 : index
    %c2_80 = arith.constant 2 : index
    %c0_81 = arith.constant 0 : index
    %c0_82 = arith.constant 0 : index
    %106 = vector.load %arg5[%c0_79, %c2_80, %c0_81, %c0_82] : memref<1x4x8x16xf32, #tpu.memory_space<vmem>>, vector<1x1x8x16xf32>
    %107 = vector.shape_cast %106 : vector<1x1x8x16xf32> to vector<8x16xf32>
    %108 = vector.shape_cast %105 : vector<8x16xf32> to vector<1x1x8x16xf32>
    tpu.vector_store %arg5[%c0_79, %c2_80, %c0_81, %c0_82], %108 {strides = array<i32>} : memref<1x4x8x16xf32, #tpu.memory_space<vmem>>, vector<1x1x8x16xf32>,
    %c0_83 = arith.constant 0 : index
    %c2_84 = arith.constant 2 : index
    %c0_85 = arith.constant 0 : index
    %c0_86 = arith.constant 0 : index
    %109 = vector.load %arg6[%c0_83, %c2_84, %c0_85, %c0_86] : memref<1x4x8x16xf32, #tpu.memory_space<vmem>>, vector<1x1x8x16xf32>
    %110 = vector.shape_cast %109 : vector<1x1x8x16xf32> to vector<8x16xf32>
    %cst_87 = arith.constant 1.000000e+00 : f32
    %cst_88 = arith.constant 0.000000e+00 : f32
    %111 = vector.broadcast %cst_87 : f32 to vector<8x16xf32>
    %112 = vector.broadcast %cst_88 : f32 to vector<8x16xf32>
    %113 = arith.select %85, %111, %112 : vector<8x16xi1>, vector<8x16xf32>
    %114 = arith.addf %110, %113 : vector<8x16xf32>
    %c0_89 = arith.constant 0 : index
    %c2_90 = arith.constant 2 : index
    %c0_91 = arith.constant 0 : index
    %c0_92 = arith.constant 0 : index
    %115 = vector.load %arg6[%c0_89, %c2_90, %c0_91, %c0_92] : memref<1x4x8x16xf32, #tpu.memory_space<vmem>>, vector<1x1x8x16xf32>
    %116 = vector.shape_cast %115 : vector<1x1x8x16xf32> to vector<8x16xf32>
    %117 = vector.shape_cast %114 : vector<8x16xf32> to vector<1x1x8x16xf32>
    tpu.vector_store %arg6[%c0_89, %c2_90, %c0_91, %c0_92], %117 {strides = array<i32>} : memref<1x4x8x16xf32, #tpu.memory_space<vmem>>, vector<1x1x8x16xf32>,
    %c3_i32 = arith.constant 3 : i32
    %118 = vector.broadcast %c3_i32 : i32 to vector<8x16xi32>
    %119 = arith.cmpi eq, %6, %118 : vector<8x16xi32>
    %120 = vector.extract_strided_slice %11 {offsets = [3, 0, 0], sizes = [1, 8, 16], strides = [1, 1, 1]} : vector<4x8x16xf32> to vector<1x8x16xf32>
    %121 = vector.shape_cast %120 : vector<1x8x16xf32> to vector<8x16xf32>
    %122 = arith.mulf %121, %13 : vector<8x16xf32>
    %cst_93 = arith.constant 0.000000e+00 : f32
    %123 = vector.broadcast %cst_93 : f32 to vector<8x16xf32>
    %124 = arith.select %119, %122, %123 : vector<8x16xi1>, vector<8x16xf32>
    %125 = arith.addf %91, %124 : vector<8x16xf32>
    %126 = vector.extract_strided_slice %10 {offsets = [3, 0, 0], sizes = [1, 8, 16], strides = [1, 1, 1]} : vector<4x8x16xf32> to vector<1x8x16xf32>
    %127 = vector.shape_cast %126 : vector<1x8x16xf32> to vector<8x16xf32>
    %cst_94 = arith.constant 0.000000e+00 : f32
    %128 = vector.broadcast %cst_94 : f32 to vector<8x16xf32>
    %129 = arith.select %119, %127, %128 : vector<8x16xi1>, vector<8x16xf32>
    %130 = arith.addf %96, %129 : vector<8x16xf32>
    %c0_95 = arith.constant 0 : index
    %c3 = arith.constant 3 : index
    %c0_96 = arith.constant 0 : index
    %c0_97 = arith.constant 0 : index
    %131 = vector.load %arg4[%c0_95, %c3, %c0_96, %c0_97] : memref<1x4x8x16xf32, #tpu.memory_space<vmem>>, vector<1x1x8x16xf32>
    %132 = vector.shape_cast %131 : vector<1x1x8x16xf32> to vector<8x16xf32>
    %133 = arith.addf %132, %124 : vector<8x16xf32>
    %c0_98 = arith.constant 0 : index
    %c3_99 = arith.constant 3 : index
    %c0_100 = arith.constant 0 : index
    %c0_101 = arith.constant 0 : index
    %134 = vector.load %arg4[%c0_98, %c3_99, %c0_100, %c0_101] : memref<1x4x8x16xf32, #tpu.memory_space<vmem>>, vector<1x1x8x16xf32>
    %135 = vector.shape_cast %134 : vector<1x1x8x16xf32> to vector<8x16xf32>
    %136 = vector.shape_cast %133 : vector<8x16xf32> to vector<1x1x8x16xf32>
    tpu.vector_store %arg4[%c0_98, %c3_99, %c0_100, %c0_101], %136 {strides = array<i32>} : memref<1x4x8x16xf32, #tpu.memory_space<vmem>>, vector<1x1x8x16xf32>,
    %c0_102 = arith.constant 0 : index
    %c3_103 = arith.constant 3 : index
    %c0_104 = arith.constant 0 : index
    %c0_105 = arith.constant 0 : index
    %137 = vector.load %arg5[%c0_102, %c3_103, %c0_104, %c0_105] : memref<1x4x8x16xf32, #tpu.memory_space<vmem>>, vector<1x1x8x16xf32>
    %138 = vector.shape_cast %137 : vector<1x1x8x16xf32> to vector<8x16xf32>
    %139 = arith.addf %138, %122 : vector<8x16xf32>
    %c0_106 = arith.constant 0 : index
    %c3_107 = arith.constant 3 : index
    %c0_108 = arith.constant 0 : index
    %c0_109 = arith.constant 0 : index
    %140 = vector.load %arg5[%c0_106, %c3_107, %c0_108, %c0_109] : memref<1x4x8x16xf32, #tpu.memory_space<vmem>>, vector<1x1x8x16xf32>
    %141 = vector.shape_cast %140 : vector<1x1x8x16xf32> to vector<8x16xf32>
    %142 = vector.shape_cast %139 : vector<8x16xf32> to vector<1x1x8x16xf32>
    tpu.vector_store %arg5[%c0_106, %c3_107, %c0_108, %c0_109], %142 {strides = array<i32>} : memref<1x4x8x16xf32, #tpu.memory_space<vmem>>, vector<1x1x8x16xf32>,
    %c0_110 = arith.constant 0 : index
    %c3_111 = arith.constant 3 : index
    %c0_112 = arith.constant 0 : index
    %c0_113 = arith.constant 0 : index
    %143 = vector.load %arg6[%c0_110, %c3_111, %c0_112, %c0_113] : memref<1x4x8x16xf32, #tpu.memory_space<vmem>>, vector<1x1x8x16xf32>
    %144 = vector.shape_cast %143 : vector<1x1x8x16xf32> to vector<8x16xf32>
    %cst_114 = arith.constant 1.000000e+00 : f32
    %cst_115 = arith.constant 0.000000e+00 : f32
    %145 = vector.broadcast %cst_114 : f32 to vector<8x16xf32>
    %146 = vector.broadcast %cst_115 : f32 to vector<8x16xf32>
    %147 = arith.select %119, %145, %146 : vector<8x16xi1>, vector<8x16xf32>
    %148 = arith.addf %144, %147 : vector<8x16xf32>
    %c0_116 = arith.constant 0 : index
    %c3_117 = arith.constant 3 : index
    %c0_118 = arith.constant 0 : index
    %c0_119 = arith.constant 0 : index
    %149 = vector.load %arg6[%c0_116, %c3_117, %c0_118, %c0_119] : memref<1x4x8x16xf32, #tpu.memory_space<vmem>>, vector<1x1x8x16xf32>
    %150 = vector.shape_cast %149 : vector<1x1x8x16xf32> to vector<8x16xf32>
    %151 = vector.shape_cast %148 : vector<8x16xf32> to vector<1x1x8x16xf32>
    tpu.vector_store %arg6[%c0_116, %c3_117, %c0_118, %c0_119], %151 {strides = array<i32>} : memref<1x4x8x16xf32, #tpu.memory_space<vmem>>, vector<1x1x8x16xf32>,
    %152 = math.log %12 : vector<8x16xf32>
    %153 = arith.subf %152, %130 : vector<8x16xf32>
    %cst_120 = arith.constant 1.000000e+00 : f32
    %154 = vector.broadcast %cst_120 : f32 to vector<8x16xf32>
    %155 = arith.subf %154, %125 : vector<8x16xf32>
    %156 = arith.mulf %155, %155 : vector<8x16xf32>
    %cst_121 = arith.constant 2.500000e-01 : f32
    %157 = vector.broadcast %cst_121 : f32 to vector<8x16xf32>
    %158 = arith.mulf %157, %156 : vector<8x16xf32>
    %159 = arith.mulf %158, %153 : vector<8x16xf32>
    %c0_122 = arith.constant 0 : index
    %c0_123 = arith.constant 0 : index
    %c0_124 = arith.constant 0 : index
    %160 = vector.load %arg7[%c0_122, %c0_123, %c0_124] : memref<1x8x16xf32, #tpu.memory_space<vmem>>, vector<1x8x16xf32>
    %161 = vector.shape_cast %160 : vector<1x8x16xf32> to vector<8x16xf32>
    %162 = arith.addf %161, %159 : vector<8x16xf32>
    %c0_125 = arith.constant 0 : index
    %c0_126 = arith.constant 0 : index
    %c0_127 = arith.constant 0 : index
    %163 = vector.load %arg7[%c0_125, %c0_126, %c0_127] : memref<1x8x16xf32, #tpu.memory_space<vmem>>, vector<1x8x16xf32>
    %164 = vector.shape_cast %163 : vector<1x8x16xf32> to vector<8x16xf32>
    %165 = vector.shape_cast %162 : vector<8x16xf32> to vector<1x8x16xf32>
    tpu.vector_store %arg7[%c0_125, %c0_126, %c0_127], %165 {strides = array<i32>} : memref<1x8x16xf32, #tpu.memory_space<vmem>>, vector<1x8x16xf32>,
    return
  }
  func.func @transform_0(%arg0: i32, %arg1: i32) -> (i32, i32, i32, i32) {
    %c0_i32 = arith.constant 0 : i32
    %c0_i32_0 = arith.constant 0 : i32
    %c0_i32_1 = arith.constant 0 : i32
    return %arg0, %c0_i32, %arg1, %c0_i32_0 : i32, i32, i32, i32
  }
  func.func @transform_1(%arg0: i32, %arg1: i32) -> (i32, i32, i32) {
    %c0_i32 = arith.constant 0 : i32
    %c0_i32_0 = arith.constant 0 : i32
    return %arg0, %arg1, %c0_i32 : i32, i32, i32
  }
  func.func @transform_2(%arg0: i32, %arg1: i32) -> (i32, i32, i32, i32) {
    %c0_i32 = arith.constant 0 : i32
    %c0_i32_0 = arith.constant 0 : i32
    %c0_i32_1 = arith.constant 0 : i32
    %c0_i32_2 = arith.constant 0 : i32
    return %arg0, %c0_i32, %c0_i32_0, %c0_i32_1 : i32, i32, i32, i32
  }
  func.func @transform_3(%arg0: i32, %arg1: i32) -> (i32, i32, i32, i32) {
    %c0_i32 = arith.constant 0 : i32
    %c0_i32_0 = arith.constant 0 : i32
    %c0_i32_1 = arith.constant 0 : i32
    %c0_i32_2 = arith.constant 0 : i32
    return %arg0, %c0_i32, %c0_i32_0, %c0_i32_1 : i32, i32, i32, i32
  }
  func.func @transform_4(%arg0: i32, %arg1: i32) -> (i32, i32, i32, i32) {
    %c0_i32 = arith.constant 0 : i32
    %c0_i32_0 = arith.constant 0 : i32
    %c0_i32_1 = arith.constant 0 : i32
    %c0_i32_2 = arith.constant 0 : i32
    return %arg0, %c0_i32, %c0_i32_0, %c0_i32_1 : i32, i32, i32, i32
  }
  func.func @transform_5(%arg0: i32, %arg1: i32) -> (i32, i32, i32) {
    %c0_i32 = arith.constant 0 : i32
    %c0_i32_0 = arith.constant 0 : i32
    %c0_i32_1 = arith.constant 0 : i32
    return %arg0, %c0_i32, %c0_i32_0 : i32, i32, i32
  }
}

</mosaic_0001>

<llo_original>
// kernel: tpu_custom_call.1
$region0: #{tpu_custom_call.1}
  #allocation0 [shape = 'u32[]', space=smem, size = 0x4, offset = 0x4, fixed_abs, tag = 'smem constant byte address 0x4 - core index']
  #allocation1 [shape = 'u32[72,128]{1,0:T(1,128)}', space=vmem, size = 0x9000, scoped, tag = 'internal scratch']
  %s0 = inlined_call_operand.hbm [shape: f32[2,4,16,16], index: 0, kind: input, shape index: {}]
  %s1 = inlined_call_operand.hbm [shape: s32[2,16,16], index: 1, kind: input, shape index: {}]
  %s2 = inlined_call_operand.hbm [shape: f32[2,4,8,16], index: 2, kind: output, shape index: {0}]
  %s3 = inlined_call_operand.hbm [shape: f32[2,4,8,16], index: 3, kind: output, shape index: {1}]
  %s4 = inlined_call_operand.hbm [shape: f32[2,4,8,16], index: 4, kind: output, shape index: {2}]
  %s5 = inlined_call_operand.hbm [shape: f32[2,8,16], index: 5, kind: output, shape index: {3}]
  %6 = xla_tuple %s2, %s3, %s4, %s5
  %s7 = sld [smem:[#allocation0]]
  $region77: #{tpu_custom_call.1} parent=0
    _
  %s9 = ssub.s32 1, %s7
  %s10 = scalar_select 0, %s9, %s7
  $region1: #{tpu_custom_call.1} parent=0
    #allocation2 [shape = 'u8[32768]{0}', space=vmem, size = 0x8000, scoped, tag = 'input window, operand 0']
    #allocation3 [shape = 's32[2]{0}', space=sflag, size = 0x8, scoped, tag = 'scoped memory for tpu_custom_call.1']
    #allocation4 [shape = 's32[2]{0}', space=sflag, size = 0x8, scoped, tag = 'scoped memory for tpu_custom_call.1']
    #allocation5 [shape = 'u8[8192]{0}', space=vmem, size = 0x2000, scoped, tag = 'input window, operand 1']
    #allocation6 [shape = 's32[2]{0}', space=sflag, size = 0x8, scoped, tag = 'scoped memory for tpu_custom_call.1']
    #allocation7 [shape = 'u8[32768]{0}', space=vmem, size = 0x8000, scoped, tag = 'output window, operand 0']
    #allocation8 [shape = 'u8[32768]{0}', space=vmem, size = 0x8000, scoped, tag = 'output window, operand 1']
    #allocation9 [shape = 's32[2]{0}', space=sflag, size = 0x8, scoped, tag = 'scoped memory for tpu_custom_call.1']
    #allocation10 [shape = 'u8[32768]{0}', space=vmem, size = 0x8000, scoped, tag = 'output window, operand 2']
    #allocation11 [shape = 'u8[8192]{0}', space=vmem, size = 0x2000, scoped, tag = 'output window, operand 3']
    #allocation12 [shape = 's32[2]{0}', space=sflag, size = 0x8, scoped, tag = 'scoped memory for tpu_custom_call.1']
    %11 = vsyncpa [#allocation3], 0
    %s12 = scalar_lea.sflag [#allocation3], 1
    %13 = vsyncpa %s12, 0
    %14 = vsyncpa [#allocation6], 0
    %s15 = scalar_lea.sflag [#allocation6], 1
    %16 = vsyncpa %s15, 0
    %17 = vsyncpa [#allocation4], 0
    %s18 = scalar_lea.sflag [#allocation4], 1
    %19 = vsyncpa %s18, 0
    %20 = vsyncpa [#allocation9], 0
    %s21 = scalar_lea.sflag [#allocation9], 1
    %22 = vsyncpa %s21, 0
    %23 = vsyncpa [#allocation12], 0
    %s24 = scalar_lea.sflag [#allocation12], 1
    %25 = vsyncpa %s24, 0
    loop: start=0, step=1, limit=6
    $region2: #{tpu_custom_call.1} parent=1 // loop_pre_header
      _
    $region3: #{tpu_custom_call.1} parent=1 // loop_header
      %s27 = sphi 0, %s31
      %p28 = scmp.ge.s32.totalorder %s27, 6
      %s34 = sphi 0, %s46
      %s35 = sphi 0, %s42
      %s36 = sphi 0, %s34
      %s37 = sphi 0, %s35
      %s38 = sphi 0, %s36
      %s39 = sphi 0, %s37
      %s51 = sphi 0, %s53
      %s54 = sphi 0, %s51
      %s55 = sphi 0, %s54
      %s71 = sphi 0, %s55
      %s79 = sphi 0, %s81
      %s82 = sphi 0, %s79
      %s83 = sphi 0, %s82
      %s99 = sphi 0, %s83
      %s105 = sphi 0, %s107
      %s108 = sphi 0, %s105
      %s109 = sphi 0, %s108
      %s125 = sphi 0, %s109
      %s131 = sphi 0, %s133
      %s134 = sphi 0, %s131
      %s135 = sphi 0, %s134
      %s151 = sphi 0, %s135
      %s157 = sphi 0, %s159
      %s160 = sphi 0, %s157
      %s161 = sphi 0, %s160
      %s177 = sphi 0, %s161
      %s183 = sphi 0, %s185
      %s186 = sphi 0, %s183
      %s187 = sphi 0, %s186
      %s203 = sphi 0, %s187
    $region4: #{tpu_custom_call.1} parent=1 // loop_header_branch
      %30 = sbr.rel (%p28) target = $region8
    $region5: #{tpu_custom_call.1} parent=1 // loop_body
      %s32 = ssub.s32 %s27, 1
      %s33 = ssub.s32 %s27, 2
      %s40 = sadd.s32 1, %s35
      %p41 = scmp.ge.s32.totalorder %s40, 2
      %s42 = scalar_select %p41, 0, %s40
      %s43 = sadd.s32 1, %s34
      %s44 = scalar_select %p41, %s43, %s34
      %p45 = scmp.ge.s32.totalorder %s44, 2
      %s46 = scalar_select %p45, 0, %s44
      %s47 = ssub.s32 %s34, %s46
      %s48 = ssub.s32 %s35, %s42
      %s49 = sor.u32 %s47, %s48
      %p50 = scmp.eq.s32.totalorder %s49, 0
      %s52 = sadd.s32 %s51, 1
      %s53 = scalar_select %p50, %s51, %s52
      %p56 = pneg %p50
      %p57 = scmp.eq.s32.totalorder %s27, 3
      %p58 = por %p56, %p57
      %p59 = scmp.ne.s32.totalorder %s51, %s54
      %p60 = scmp.eq.s32.totalorder %s27, 0
      %p61 = por %p59, %p60
      %p62 = scmp.ne.s32.totalorder %s51, %s54
      %p63 = scmp.eq.s32.totalorder %s32, 3
      %p64 = por %p62, %p63
      %p65 = scmp.ne.s32.totalorder %s54, %s55
      %p66 = scmp.eq.s32.totalorder %s32, 0
      %p67 = por %p65, %p66
      %p68 = scmp.ne.s32.totalorder %s54, %s55
      %p69 = scmp.eq.s32.totalorder %s33, 3
      %p70 = por %p68, %p69
      %p72 = scmp.ne.s32.totalorder %s55, %s71
      %p73 = scmp.eq.s32.totalorder %s33, 0
      %p74 = por %p72, %p73
      %s75 = ssub.s32 %s34, %s46
      %s76 = ssub.s32 %s35, %s42
      %s77 = sor.u32 %s75, %s76
      %p78 = scmp.eq.s32.totalorder %s77, 0
      %s80 = sadd.s32 %s79, 1
      %s81 = scalar_select %p78, %s79, %s80
      %p84 = pneg %p78
      %p85 = scmp.eq.s32.totalorder %s27, 3
      %p86 = por %p84, %p85
      %p87 = scmp.ne.s32.totalorder %s79, %s82
      %p88 = scmp.eq.s32.totalorder %s27, 0
      %p89 = por %p87, %p88
      %p90 = scmp.ne.s32.totalorder %s79, %s82
      %p91 = scmp.eq.s32.totalorder %s32, 3
      %p92 = por %p90, %p91
      %p93 = scmp.ne.s32.totalorder %s82, %s83
      %p94 = scmp.eq.s32.totalorder %s32, 0
      %p95 = por %p93, %p94
      %p96 = scmp.ne.s32.totalorder %s82, %s83
      %p97 = scmp.eq.s32.totalorder %s33, 3
      %p98 = por %p96, %p97
      %p100 = scmp.ne.s32.totalorder %s83, %s99
      %p101 = scmp.eq.s32.totalorder %s33, 0
      %p102 = por %p100, %p101
      %s103 = ssub.s32 %s34, %s46
      %p104 = scmp.eq.s32.totalorder %s103, 0
      %s106 = sadd.s32 %s105, 1
      %s107 = scalar_select %p104, %s105, %s106
      %p110 = pneg %p104
      %p111 = scmp.eq.s32.totalorder %s27, 3
      %p112 = por %p110, %p111
      %p113 = scmp.ne.s32.totalorder %s105, %s108
      %p114 = scmp.eq.s32.totalorder %s27, 0
      %p115 = por %p113, %p114
      %p116 = scmp.ne.s32.totalorder %s105, %s108
      %p117 = scmp.eq.s32.totalorder %s32, 3
      %p118 = por %p116, %p117
      %p119 = scmp.ne.s32.totalorder %s108, %s109
      %p120 = scmp.eq.s32.totalorder %s32, 0
      %p121 = por %p119, %p120
      %p122 = scmp.ne.s32.totalorder %s108, %s109
      %p123 = scmp.eq.s32.totalorder %s33, 3
      %p124 = por %p122, %p123
      %p126 = scmp.ne.s32.totalorder %s109, %s125
      %p127 = scmp.eq.s32.totalorder %s33, 0
      %p128 = por %p126, %p127
      %s129 = ssub.s32 %s34, %s46
      %p130 = scmp.eq.s32.totalorder %s129, 0
      %s132 = sadd.s32 %s131, 1
      %s133 = scalar_select %p130, %s131, %s132
      %p136 = pneg %p130
      %p137 = scmp.eq.s32.totalorder %s27, 3
      %p138 = por %p136, %p137
      %p139 = scmp.ne.s32.totalorder %s131, %s134
      %p140 = scmp.eq.s32.totalorder %s27, 0
      %p141 = por %p139, %p140
      %p142 = scmp.ne.s32.totalorder %s131, %s134
      %p143 = scmp.eq.s32.totalorder %s32, 3
      %p144 = por %p142, %p143
      %p145 = scmp.ne.s32.totalorder %s134, %s135
      %p146 = scmp.eq.s32.totalorder %s32, 0
      %p147 = por %p145, %p146
      %p148 = scmp.ne.s32.totalorder %s134, %s135
      %p149 = scmp.eq.s32.totalorder %s33, 3
      %p150 = por %p148, %p149
      %p152 = scmp.ne.s32.totalorder %s135, %s151
      %p153 = scmp.eq.s32.totalorder %s33, 0
      %p154 = por %p152, %p153
      %s155 = ssub.s32 %s34, %s46
      %p156 = scmp.eq.s32.totalorder %s155, 0
      %s158 = sadd.s32 %s157, 1
      %s159 = scalar_select %p156, %s157, %s158
      %p162 = pneg %p156
      %p163 = scmp.eq.s32.totalorder %s27, 3
      %p164 = por %p162, %p163
      %p165 = scmp.ne.s32.totalorder %s157, %s160
      %p166 = scmp.eq.s32.totalorder %s27, 0
      %p167 = por %p165, %p166
      %p168 = scmp.ne.s32.totalorder %s157, %s160
      %p169 = scmp.eq.s32.totalorder %s32, 3
      %p170 = por %p168, %p169
      %p171 = scmp.ne.s32.totalorder %s160, %s161
      %p172 = scmp.eq.s32.totalorder %s32, 0
      %p173 = por %p171, %p172
      %p174 = scmp.ne.s32.totalorder %s160, %s161
      %p175 = scmp.eq.s32.totalorder %s33, 3
      %p176 = por %p174, %p175
      %p178 = scmp.ne.s32.totalorder %s161, %s177
      %p179 = scmp.eq.s32.totalorder %s33, 0
      %p180 = por %p178, %p179
      %s181 = ssub.s32 %s34, %s46
      %p182 = scmp.eq.s32.totalorder %s181, 0
      %s184 = sadd.s32 %s183, 1
      %s185 = scalar_select %p182, %s183, %s184
      %p188 = pneg %p182
      %p189 = scmp.eq.s32.totalorder %s27, 3
      %p190 = por %p188, %p189
      %p191 = scmp.ne.s32.totalorder %s183, %s186
      %p192 = scmp.eq.s32.totalorder %s27, 0
      %p193 = por %p191, %p192
      %p194 = scmp.ne.s32.totalorder %s183, %s186
      %p195 = scmp.eq.s32.totalorder %s32, 3
      %p196 = por %p194, %p195
      %p197 = scmp.ne.s32.totalorder %s186, %s187
      %p198 = scmp.eq.s32.totalorder %s32, 0
      %p199 = por %p197, %p198
      %p200 = scmp.ne.s32.totalorder %s186, %s187
      %p201 = scmp.eq.s32.totalorder %s33, 3
      %p202 = por %p200, %p201
      %p204 = scmp.ne.s32.totalorder %s187, %s203
      %p205 = scmp.eq.s32.totalorder %s33, 0
      %p206 = por %p204, %p205
      %p207 = scmp.le.s32.totalorder 1, %s27
      %p208 = scmp.lt.s32.totalorder %s27, 5
      %p209 = pnand %p207, %p208
      %p210 = pneg %p209
      // Predicated region
      $region9: #{tpu_custom_call.1} parent=5 // pred_check
        _
      $region10: #{tpu_custom_call.1} parent=5 // pred_check_branch
        %212 = sbr.rel (%p209) target = $region12
      $region11: #{tpu_custom_call.1} parent=5 // pred_region
        %s213 = ssub.s32 %s27, 1
      $region12: #{tpu_custom_call.1} parent=5 // pred_fallthru
        _
      %p214 = scmp.lt.s32.totalorder %s27, 4
      // Predicated region
      $region13: #{tpu_custom_call.1} parent=5 // pred_check
        %p215 = pneg %p214
      $region14: #{tpu_custom_call.1} parent=5 // pred_check_branch
        %217 = sbr.rel (%p215) target = $region16
      $region15: #{tpu_custom_call.1} parent=5 // pred_region
        // Predicated region
        $region17: #{tpu_custom_call.1} parent=15 // pred_check
          %p218 = pneg %p61
        $region18: #{tpu_custom_call.1} parent=15 // pred_check_branch
          %220 = sbr.rel (%p218) target = $region20
        $region19: #{tpu_custom_call.1} parent=15 // pred_region
          %s221 = sand.u32 %s51, 1
          %s222 = scalar_lea.sflag [#allocation3], %s221
          %s223 = sand.u32 %s51, 1
          %s224 = smul.addr %s223, 32
          %s225 = scalar_lea.vmem [#allocation2], %s224
          %227 = vsyncadd %s222, 0
          %s228 = smul.addr %s34, 8
          %s229 = sadd.s32 %s35, %s228
          %s230 = smul.addr %s229, 8
          %s231 = scalar_lea.hbm %s0, %s230
          %s232 = sshll.u32 %s231, 4
          %s233 = int_to_ptr.hbm [resolvable:$true] %s232
          %s234 = sshll.u32 %s225, 4
          %s235 = int_to_ptr.vmem [resolvable:$true] %s234
          %240 = dma.hbm_to_vmem [thread:$0]  %s233, 512, %s235, %s222, 256, 128, 8
        $region20: #{tpu_custom_call.1} parent=15 // pred_fallthru
          _
        // Predicated region
        $region21: #{tpu_custom_call.1} parent=15 // pred_check
          %p241 = pneg %p89
        $region22: #{tpu_custom_call.1} parent=15 // pred_check_branch
          %243 = sbr.rel (%p241) target = $region24
        $region23: #{tpu_custom_call.1} parent=15 // pred_region
          %s244 = sand.u32 %s79, 1
          %s245 = scalar_lea.sflag [#allocation6], %s244
          %s246 = sand.u32 %s79, 1
          %s247 = smul.addr %s246, 8
          %s248 = scalar_lea.vmem [#allocation5], %s247
          %250 = vsyncadd %s245, 0
          %s251 = smul.addr %s34, 2
          %s252 = sadd.s32 %s35, %s251
          %s253 = smul.addr %s252, 8
          %s254 = scalar_lea.hbm %s1, %s253
          %s256 = sshll.u32 %s254, 4
          %s257 = int_to_ptr.hbm [resolvable:$true] %s256
          %s258 = sshll.u32 %s248, 4
          %s259 = int_to_ptr.vmem [resolvable:$true] %s258
          %261 = dma.hbm_to_vmem [thread:$0]  %s257, 128, %s259, %s245
        $region24: #{tpu_custom_call.1} parent=15 // pred_fallthru
          _
      $region16: #{tpu_custom_call.1} parent=5 // pred_fallthru
        _
      %p262 = scmp.le.s32.totalorder 1, %s27
      %p263 = scmp.lt.s32.totalorder %s27, 5
      %p264 = pnand %p262, %p263
      %p265 = pneg %p264
      // Predicated region
      $region25: #{tpu_custom_call.1} parent=5 // pred_check
        _
      $region26: #{tpu_custom_call.1} parent=5 // pred_check_branch
        %267 = sbr.rel (%p264) target = $region28
      $region27: #{tpu_custom_call.1} parent=5 // pred_region
        %s268 = ssub.s32 %s27, 1
        %s269 = sand.u32 %s54, 1
        %s270 = scalar_lea.sflag [#allocation3], %s269
        %s271 = sand.u32 %s54, 1
        %s272 = smul.addr %s271, 32
        %s273 = scalar_lea.vmem [#allocation2], %s272
        // Predicated region
        $region29: #{tpu_custom_call.1} parent=27 // pred_check
          %p274 = pneg %p67
        $region30: #{tpu_custom_call.1} parent=27 // pred_check_branch
          %276 = sbr.rel (%p274) target = $region32
        $region31: #{tpu_custom_call.1} parent=27 // pred_region
          %278 = dma.done %s270, 512
        $region32: #{tpu_custom_call.1} parent=27 // pred_fallthru
          _
        %s279 = sand.u32 %s82, 1
        %s280 = scalar_lea.sflag [#allocation6], %s279
        %s281 = sand.u32 %s82, 1
        %s282 = smul.addr %s281, 8
        %s283 = scalar_lea.vmem [#allocation5], %s282
        // Predicated region
        $region33: #{tpu_custom_call.1} parent=27 // pred_check
          %p284 = pneg %p95
        $region34: #{tpu_custom_call.1} parent=27 // pred_check_branch
          %286 = sbr.rel (%p284) target = $region36
        $region35: #{tpu_custom_call.1} parent=27 // pred_region
          %288 = dma.done %s280, 128
        $region36: #{tpu_custom_call.1} parent=27 // pred_fallthru
          _
        %s289 = sand.u32 %s54, 1
        %s290 = scalar_lea.sflag [#allocation3], %s289
        %s291 = sand.u32 %s54, 1
        %s292 = smul.addr %s291, 32
        %s293 = scalar_lea.vmem [#allocation2], %s292
        %p294 = pneg %p67
        %p295 = pneg %p64
        %s296 = sand.u32 %s82, 1
        %s297 = scalar_lea.sflag [#allocation6], %s296
        %s298 = sand.u32 %s82, 1
        %s299 = smul.addr %s298, 8
        %s300 = scalar_lea.vmem [#allocation5], %s299
        %p301 = pneg %p95
        %p302 = pneg %p92
        %p303 = pneg %p121
        %p304 = pneg %p118
        %s305 = sand.u32 %s108, 1
        %s306 = scalar_lea.sflag [#allocation4], %s305
        %s307 = sand.u32 %s108, 1
        %s308 = smul.addr %s307, 32
        %s309 = scalar_lea.vmem [#allocation7], %s308
        %p310 = pneg %p147
        %p311 = pneg %p144
        %s312 = sand.u32 %s32, 1
        %s313 = scalar_lea.sflag [#allocation9], %s312
        %s314 = sand.u32 %s134, 1
        %s315 = smul.addr %s314, 32
        %s316 = scalar_lea.vmem [#allocation8], %s315
        %p317 = pneg %p173
        %p318 = pneg %p170
        %s319 = sand.u32 %s32, 1
        %s320 = scalar_lea.sflag [#allocation9], %s319
        %s321 = sand.u32 %s160, 1
        %s322 = smul.addr %s321, 32
        %s323 = scalar_lea.vmem [#allocation10], %s322
        %p324 = pneg %p199
        %p325 = pneg %p196
        %s326 = sand.u32 %s186, 1
        %s327 = scalar_lea.sflag [#allocation12], %s326
        %s328 = sand.u32 %s186, 1
        %s329 = smul.addr %s328, 8
        %s330 = scalar_lea.vmem [#allocation11], %s329
        %p331 = scmp.eq.s32.totalorder %s37, 0
        // Predicated region
        $region37: #{tpu_custom_call.1} parent=27 // pred_check
          %p332 = pneg %p331
        $region38: #{tpu_custom_call.1} parent=27 // pred_check_branch
          %334 = sbr.rel (%p332) target = $region40
        $region39: #{tpu_custom_call.1} parent=27 // pred_region
          %vm335 = vcmask 130048
          %336 = vst.msk [vmem:[%s309] sm:$0xff] %vm335, 0.0
          %337 = vst.msk [vmem:[%s309 + $0x8] sm:$0xff] %vm335, 0.0
          %338 = vst.msk [vmem:[%s309 + $0x10] sm:$0xff] %vm335, 0.0
          %339 = vst.msk [vmem:[%s309 + $0x18] sm:$0xff] %vm335, 0.0
          %340 = vst.msk [vmem:[%s316] sm:$0xff] %vm335, 0.0
          %341 = vst.msk [vmem:[%s316 + $0x8] sm:$0xff] %vm335, 0.0
          %342 = vst.msk [vmem:[%s316 + $0x10] sm:$0xff] %vm335, 0.0
          %343 = vst.msk [vmem:[%s316 + $0x18] sm:$0xff] %vm335, 0.0
          %344 = vst.msk [vmem:[%s323] sm:$0xff] %vm335, 0.0
          %345 = vst.msk [vmem:[%s323 + $0x8] sm:$0xff] %vm335, 0.0
          %346 = vst.msk [vmem:[%s323 + $0x10] sm:$0xff] %vm335, 0.0
          %347 = vst.msk [vmem:[%s323 + $0x18] sm:$0xff] %vm335, 0.0
          %348 = vst.msk [vmem:[%s330] sm:$0xff] %vm335, 0.0
        $region40: #{tpu_custom_call.1} parent=27 // pred_fallthru
          _
        %v349 = vld [vmem:[%s273] sm:$0xff]
        %v350 = vld [vmem:[%s273 + $0x8] sm:$0xff]
        %v351 = vld [vmem:[%s273 + $0x10] sm:$0xff]
        %v352 = vld [vmem:[%s273 + $0x18] sm:$0xff]
        %v353 = vld [vmem:[%s283] sm:$0xff]
        %vm354 = vcmask 130048
        %v355 = vsel %vm354, %v349, -inf
        %v356 = vsel %vm354, %v350, -inf
        %v357 = vsel %vm354, %v351, -inf
        %v358 = vsel %vm354, %v352, -inf
        %v359 = vmax.f32 %v355, %v356
        %v360 = vmax.f32 %v357, %v358
        %v361 = vmax.f32 %v359, %v360
        %v362 = vsub.f32 %v349, %v361
        %v363 = vsub.f32 %v350, %v361
        %v364 = vsub.f32 %v351, %v361
        %v365 = vsub.f32 %v352, %v361
        %v366 = vmul.f32 %v362, 1.442695
        %v367 = vpow.pop %v366
        %v368 = vmul.f32 %v363, 1.442695
        %v369 = vpow.pop %v368
        %v370 = vmul.f32 %v364, 1.442695
        %v371 = vpow.pop %v370
        %v372 = vmul.f32 %v365, 1.442695
        %v373 = vpow.pop %v372
        %v374 = vsel %vm354, %v367, 0.0
        %v375 = vsel %vm354, %v369, 0.0
        %v376 = vadd.f32 %v374, %v375
        %v377 = vsel %vm354, %v371, 0.0
        %v378 = vadd.f32 %v376, %v377
        %v379 = vsel %vm354, %v373, 0.0
        %v380 = vadd.f32 %v378, %v379
        %v381 = vrcp.pop %v380
        %vm382 = vcmp.eq.s32.totalorder %v353, 0
        %v383 = vmul.f32 %v367, %v381
        %v384 = vsel %vm382, %v383, 0.0
        %v385 = vadd.f32 %v384, 0.0
        %v386 = vsel %vm382, %v362, 0.0
        %v387 = vadd.f32 %v386, 0.0
        %v388 = vld [vmem:[%s309] sm:$0xff]
        %v389 = vadd.f32 %v388, %v384
        %390 = vst.msk [vmem:[%s309] sm:$0xff] %vm354, %v389
        %v391 = vld [vmem:[%s316] sm:$0xff]
        %v392 = vadd.f32 %v391, %v383
        %393 = vst.msk [vmem:[%s316] sm:$0xff] %vm354, %v392
        %v394 = vld [vmem:[%s323] sm:$0xff]
        %v395 = vsel %vm382, 1.0, 0.0
        %v396 = vadd.f32 %v394, %v395
        %397 = vst.msk [vmem:[%s323] sm:$0xff] %vm354, %v396
        %vm398 = vcmp.eq.s32.totalorder %v353, 1
        %v399 = vmul.f32 %v369, %v381
        %v400 = vsel %vm398, %v399, 0.0
        %v401 = vadd.f32 %v385, %v400
        %v402 = vsel %vm398, %v363, 0.0
        %v403 = vadd.f32 %v387, %v402
        %s404 = scalar_lea.vmem %s309, 8 [#allocation7]
        %v405 = vld [vmem:[%s404] sm:$0xff]
        %v406 = vadd.f32 %v405, %v400
        %407 = vst.msk [vmem:[%s404] sm:$0xff] %vm354, %v406
        %s408 = scalar_lea.vmem %s316, 8 [#allocation8]
        %v409 = vld [vmem:[%s408] sm:$0xff]
        %v410 = vadd.f32 %v409, %v399
        %411 = vst.msk [vmem:[%s408] sm:$0xff] %vm354, %v410
        %s412 = scalar_lea.vmem %s323, 8 [#allocation10]
        %v413 = vld [vmem:[%s412] sm:$0xff]
        %v414 = vsel %vm398, 1.0, 0.0
        %v415 = vadd.f32 %v413, %v414
        %416 = vst.msk [vmem:[%s412] sm:$0xff] %vm354, %v415
        %vm417 = vcmp.eq.s32.totalorder %v353, 2
        %v418 = vmul.f32 %v371, %v381
        %v419 = vsel %vm417, %v418, 0.0
        %v420 = vadd.f32 %v401, %v419
        %v421 = vsel %vm417, %v364, 0.0
        %v422 = vadd.f32 %v403, %v421
        %s423 = scalar_lea.vmem %s309, 16 [#allocation7]
        %v424 = vld [vmem:[%s423] sm:$0xff]
        %v425 = vadd.f32 %v424, %v419
        %426 = vst.msk [vmem:[%s423] sm:$0xff] %vm354, %v425
        %s427 = scalar_lea.vmem %s316, 16 [#allocation8]
        %v428 = vld [vmem:[%s427] sm:$0xff]
        %v429 = vadd.f32 %v428, %v418
        %430 = vst.msk [vmem:[%s427] sm:$0xff] %vm354, %v429
        %s431 = scalar_lea.vmem %s323, 16 [#allocation10]
        %v432 = vld [vmem:[%s431] sm:$0xff]
        %v433 = vsel %vm417, 1.0, 0.0
        %v434 = vadd.f32 %v432, %v433
        %435 = vst.msk [vmem:[%s431] sm:$0xff] %vm354, %v434
        %vm436 = vcmp.eq.s32.totalorder %v353, 3
        %v437 = vmul.f32 %v373, %v381
        %v438 = vsel %vm436, %v437, 0.0
        %v439 = vadd.f32 %v420, %v438
        %v440 = vsel %vm436, %v365, 0.0
        %v441 = vadd.f32 %v422, %v440
        %s442 = scalar_lea.vmem %s309, 24 [#allocation7]
        %v443 = vld [vmem:[%s442] sm:$0xff]
        %v444 = vadd.f32 %v443, %v438
        %445 = vst.msk [vmem:[%s442] sm:$0xff] %vm354, %v444
        %s446 = scalar_lea.vmem %s316, 24 [#allocation8]
        %v447 = vld [vmem:[%s446] sm:$0xff]
        %v448 = vadd.f32 %v447, %v437
        %449 = vst.msk [vmem:[%s446] sm:$0xff] %vm354, %v448
        %s450 = scalar_lea.vmem %s323, 24 [#allocation10]
        %v451 = vld [vmem:[%s450] sm:$0xff]
        %v452 = vsel %vm436, 1.0, 0.0
        %v453 = vadd.f32 %v451, %v452
        %454 = vst.msk [vmem:[%s450] sm:$0xff] %vm354, %v453
        %v455 = vlog2.pop %v380
        %v456 = vmul.f32 %v455, 0.6931472
        %v457 = vsub.f32 %v456, %v441
        %v458 = vsub.f32 1.0, %v439
        %v459 = vmul.f32 %v458, %v458
        %v460 = vmul.f32 %v459, 0.25
        %v461 = vmul.f32 %v460, %v457
        %v462 = vld [vmem:[%s330] sm:$0xff]
        %v463 = vadd.f32 %v462, %v461
        %464 = vst.msk [vmem:[%s330] sm:$0xff] %vm354, %v463
        %s465 = sand.u32 %s108, 1
        %s466 = scalar_lea.sflag [#allocation4], %s465
        %s467 = sand.u32 %s108, 1
        %s468 = smul.addr %s467, 32
        %s469 = scalar_lea.vmem [#allocation7], %s468
        %s470 = sand.u32 %s32, 1
        %s471 = scalar_lea.sflag [#allocation9], %s470
        %s472 = sand.u32 %s134, 1
        %s473 = smul.addr %s472, 32
        %s474 = scalar_lea.vmem [#allocation8], %s473
        %s475 = sand.u32 %s32, 1
        %s476 = scalar_lea.sflag [#allocation9], %s475
        %s477 = sand.u32 %s160, 1
        %s478 = smul.addr %s477, 32
        %s479 = scalar_lea.vmem [#allocation10], %s478
        %s480 = sand.u32 %s186, 1
        %s481 = scalar_lea.sflag [#allocation12], %s480
        %s482 = sand.u32 %s186, 1
        %s483 = smul.addr %s482, 8
        %s484 = scalar_lea.vmem [#allocation11], %s483
        // Predicated region
        $region41: #{tpu_custom_call.1} parent=27 // pred_check
          %p485 = pneg %p118
        $region42: #{tpu_custom_call.1} parent=27 // pred_check_branch
          %487 = sbr.rel (%p485) target = $region44
        $region43: #{tpu_custom_call.1} parent=27 // pred_region
          %489 = vsyncadd %s466, 0
          %s490 = smul.addr %s36, 4
          %s491 = smul.addr %s490, 8
          %s492 = scalar_lea.hbm %s2, %s491
          %s493 = sshll.u32 %s469, 4
          %s494 = int_to_ptr.vmem [resolvable:$true] %s493
          %s495 = sshll.u32 %s492, 4
          %s496 = int_to_ptr.hbm [resolvable:$true] %s495
          %501 = dma.vmem_to_hbm [thread:$0]  %s494, 512, %s496, %s466, 128, 128, 8
        $region44: #{tpu_custom_call.1} parent=27 // pred_fallthru
          _
        // Predicated region
        $region45: #{tpu_custom_call.1} parent=27 // pred_check
          %p502 = pneg %p144
        $region46: #{tpu_custom_call.1} parent=27 // pred_check_branch
          %504 = sbr.rel (%p502) target = $region48
        $region47: #{tpu_custom_call.1} parent=27 // pred_region
          %506 = vsyncadd %s471, 0
          %s507 = smul.addr %s36, 4
          %s508 = smul.addr %s507, 8
          %s509 = scalar_lea.hbm %s3, %s508
          %s510 = sshll.u32 %s474, 4
          %s511 = int_to_ptr.vmem [resolvable:$true] %s510
          %s512 = sshll.u32 %s509, 4
          %s513 = int_to_ptr.hbm [resolvable:$true] %s512
          %518 = dma.vmem_to_hbm [thread:$0]  %s511, 512, %s513, %s471, 128, 128, 8
        $region48: #{tpu_custom_call.1} parent=27 // pred_fallthru
          _
        // Predicated region
        $region49: #{tpu_custom_call.1} parent=27 // pred_check
          %p519 = pneg %p170
        $region50: #{tpu_custom_call.1} parent=27 // pred_check_branch
          %521 = sbr.rel (%p519) target = $region52
        $region51: #{tpu_custom_call.1} parent=27 // pred_region
          %523 = vsyncadd %s476, 0
          %s524 = smul.addr %s36, 4
          %s525 = smul.addr %s524, 8
          %s526 = scalar_lea.hbm %s4, %s525
          %s527 = sshll.u32 %s479, 4
          %s528 = int_to_ptr.vmem [resolvable:$true] %s527
          %s529 = sshll.u32 %s526, 4
          %s530 = int_to_ptr.hbm [resolvable:$true] %s529
          %535 = dma.vmem_to_hbm [thread:$0]  %s528, 512, %s530, %s476, 128, 128, 8
        $region52: #{tpu_custom_call.1} parent=27 // pred_fallthru
          _
        // Predicated region
        $region53: #{tpu_custom_call.1} parent=27 // pred_check
          %p536 = pneg %p196
        $region54: #{tpu_custom_call.1} parent=27 // pred_check_branch
          %538 = sbr.rel (%p536) target = $region56
        $region55: #{tpu_custom_call.1} parent=27 // pred_region
          %540 = vsyncadd %s481, 0
          %s541 = smul.addr %s36, 8
          %s542 = scalar_lea.hbm %s5, %s541
          %s544 = sshll.u32 %s484, 4
          %s545 = int_to_ptr.vmem [resolvable:$true] %s544
          %s546 = sshll.u32 %s542, 4
          %s547 = int_to_ptr.hbm [resolvable:$true] %s546
          %549 = dma.vmem_to_hbm [thread:$0]  %s545, 128, %s547, %s481
        $region56: #{tpu_custom_call.1} parent=27 // pred_fallthru
          _
      $region28: #{tpu_custom_call.1} parent=5 // pred_fallthru
        _
      %p550 = scmp.le.s32.totalorder 2, %s27
      // Predicated region
      $region57: #{tpu_custom_call.1} parent=5 // pred_check
        %p551 = pneg %p550
      $region58: #{tpu_custom_call.1} parent=5 // pred_check_branch
        %553 = sbr.rel (%p551) target = $region60
      $region59: #{tpu_custom_call.1} parent=5 // pred_region
        %s554 = ssub.s32 %s27, 2
        // Predicated region
        $region61: #{tpu_custom_call.1} parent=59 // pred_check
          %p555 = pneg %p124
        $region62: #{tpu_custom_call.1} parent=59 // pred_check_branch
          %557 = sbr.rel (%p555) target = $region64
        $region63: #{tpu_custom_call.1} parent=59 // pred_region
          %s558 = sand.u32 %s109, 1
          %s559 = scalar_lea.sflag [#allocation4], %s558
          %s560 = sand.u32 %s109, 1
          %s561 = smul.addr %s560, 32
          %s562 = scalar_lea.vmem [#allocation7], %s561
          %564 = dma.done %s559, 512
        $region64: #{tpu_custom_call.1} parent=59 // pred_fallthru
          _
        // Predicated region
        $region65: #{tpu_custom_call.1} parent=59 // pred_check
          %p565 = pneg %p150
        $region66: #{tpu_custom_call.1} parent=59 // pred_check_branch
          %567 = sbr.rel (%p565) target = $region68
        $region67: #{tpu_custom_call.1} parent=59 // pred_region
          %s568 = sand.u32 %s33, 1
          %s569 = scalar_lea.sflag [#allocation9], %s568
          %s570 = sand.u32 %s135, 1
          %s571 = smul.addr %s570, 32
          %s572 = scalar_lea.vmem [#allocation8], %s571
          %574 = dma.done %s569, 512
        $region68: #{tpu_custom_call.1} parent=59 // pred_fallthru
          _
        // Predicated region
        $region69: #{tpu_custom_call.1} parent=59 // pred_check
          %p575 = pneg %p176
        $region70: #{tpu_custom_call.1} parent=59 // pred_check_branch
          %577 = sbr.rel (%p575) target = $region72
        $region71: #{tpu_custom_call.1} parent=59 // pred_region
          %s578 = sand.u32 %s33, 1
          %s579 = scalar_lea.sflag [#allocation9], %s578
          %s580 = sand.u32 %s161, 1
          %s581 = smul.addr %s580, 32
          %s582 = scalar_lea.vmem [#allocation10], %s581
          %584 = dma.done %s579, 512
        $region72: #{tpu_custom_call.1} parent=59 // pred_fallthru
          _
        // Predicated region
        $region73: #{tpu_custom_call.1} parent=59 // pred_check
          %p585 = pneg %p202
        $region74: #{tpu_custom_call.1} parent=59 // pred_check_branch
          %587 = sbr.rel (%p585) target = $region76
        $region75: #{tpu_custom_call.1} parent=59 // pred_region
          %s588 = sand.u32 %s187, 1
          %s589 = scalar_lea.sflag [#allocation12], %s588
          %s590 = sand.u32 %s187, 1
          %s591 = smul.addr %s590, 8
          %s592 = scalar_lea.vmem [#allocation11], %s591
          %594 = dma.done %s589, 128
        $region76: #{tpu_custom_call.1} parent=59 // pred_fallthru
          _
      $region60: #{tpu_custom_call.1} parent=5 // pred_fallthru
        _
    $region6: #{tpu_custom_call.1} parent=1 // loop_footer
      %s31 = sadd.s32 1, %s27
    $region7: #{tpu_custom_call.1} parent=1 // loop_footer_branch
      %26 = sbr.rel target = $region3
    $region8: #{tpu_custom_call.1} parent=1 // loop_exit
      _
    %595 = vsyncpa [#allocation3], 1
    %s596 = scalar_lea.sflag [#allocation3], 1
    %597 = vsyncpa %s596, 1
    %598 = vsyncpa [#allocation6], 1
    %s599 = scalar_lea.sflag [#allocation6], 1
    %600 = vsyncpa %s599, 1
    %601 = vsyncpa [#allocation4], 1
    %s602 = scalar_lea.sflag [#allocation4], 1
    %603 = vsyncpa %s602, 1
    %604 = vsyncpa [#allocation9], 1
    %s605 = scalar_lea.sflag [#allocation9], 1
    %606 = vsyncpa %s605, 1
    %607 = vsyncpa [#allocation12], 1
    %s608 = scalar_lea.sflag [#allocation12], 1
    %609 = vsyncpa %s608, 1

</llo_original>
